<compile_context>
chip_gen: v6e
topology: v6e:2x2x1
jax: 0.10.0
libtpu: 0.0.40
codegen_flags: <defaults>
</compile_context>

<pallas_src>
import jax
import jax.numpy as jnp
import numpy as np
from jax.experimental import pallas as pl
from jax.experimental.pallas import tpu as pltpu


def _make_pooling_kernel(pool_size, H, W):
    pad = pool_size // 2
    taps = [(di, dj) for di in range(pool_size) for dj in range(pool_size)]

    def kernel(inv_ref, x_ref, o_ref, pad_ref):
        # x_ref: (TB, H, W) in input dtype; accumulate in f32.
        xf = x_ref[...].astype(jnp.float32)

        # Zero-padded copy of the planes. Zero every step (cheap VMEM fill,
        # and megacore-safe: each core owns its own scratch).
        pad_ref[...] = jnp.zeros_like(pad_ref)
        pad_ref[:, pad:pad + H, pad:pad + W] = xf

        # pool_size x pool_size window sum via shifted static slices
        # (no masks, no selects, no lane rotations).
        di0, dj0 = taps[0]
        s = pad_ref[:, di0:di0 + H, dj0:dj0 + W]
        for di, dj in taps[1:]:
            s = s + pad_ref[:, di:di + H, dj:dj + W]

        # count_include_pad=False divisor, precomputed as 1/count (exact).
        out = s * inv_ref[...] - xf           # (H,W) broadcasts over TB
        o_ref[...] = out.astype(o_ref.dtype)

    return kernel


def _vmem_tile_bytes(rows, cols, itemsize):
    # Conservative padded (sublane, lane) footprint of the last two dims.
    return (-(-rows // 16) * 16) * (-(-cols // 128) * 128) * itemsize


def _pick_tb(N, H, W, pad, itemsize, budget_bytes=8 * 1024 * 1024):
    Hp, Wp = H + 2 * pad, W + 2 * pad
    per_tb = (4 * _vmem_tile_bytes(H, W, itemsize)   # double-buffered in + out
              + _vmem_tile_bytes(Hp, Wp, 4))         # f32 padded scratch
    tb = max(1, budget_bytes // per_tb)
    tb = min(tb, N)
    if N >= 2:
        tb = min(tb, -(-N // 2))   # keep >= 2 grid steps so both TCs get work
    return int(tb)


def _inv_count(pool_size, H, W):
    pad = pool_size // 2

    def counts(n):
        i = np.arange(n)
        lo = np.maximum(i - pad, 0)
        hi = np.minimum(i - pad + pool_size - 1, n - 1)
        return (hi - lo + 1).astype(np.float32)

    rc = counts(H)[:, None]
    cc = counts(W)[None, :]
    return jnp.asarray(1.0 / (rc * cc), dtype=jnp.float32)


def pooling_forward(x, pool_size=3):
    """x: (B, C, H, W) NCHW. Returns AvgPool2d(x) - x with PyTorch semantics."""
    # TODO(synk): even pool_size changes the output spatial size in PyTorch
    # (H+2*pad-k+1 != H); only odd pool_size is supported here.
    assert pool_size % 2 == 1, "only odd pool_size supported"
    B, C, H, W = x.shape
    pad = pool_size // 2
    N = B * C
    itemsize = jnp.dtype(x.dtype).itemsize

    TB = _pick_tb(N, H, W, pad, itemsize)
    G = -(-N // TB)
    Npad = G * TB

    xf = x.reshape(N, H, W)                    # free reinterpretation, no cast
    if Npad != N:
        xf = jnp.pad(xf, ((0, Npad - N), (0, 0), (0, 0)))

    inv = _inv_count(pool_size, H, W)
    Hp, Wp = H + 2 * pad, W + 2 * pad

    kernel = _make_pooling_kernel(pool_size, H, W)
    out = pl.pallas_call(
        kernel,
        out_shape=jax.ShapeDtypeStruct((Npad, H, W), x.dtype),
        grid=(G,),
        in_specs=[
            pl.BlockSpec((H, W), lambda i: (0, 0)),          # resident 1/count
            pl.BlockSpec((TB, H, W), lambda i: (i, 0, 0)),   # TB planes / step
        ],
        out_specs=pl.BlockSpec((TB, H, W), lambda i: (i, 0, 0)),
        scratch_shapes=[pltpu.VMEM((TB, Hp, Wp), jnp.float32)],
        compiler_params=pltpu.CompilerParams(
            dimension_semantics=("parallel",)),
        cost_estimate=pl.CostEstimate(
            flops=int(N * H * W * (pool_size * pool_size + 2)),
            transcendentals=0,
            bytes_accessed=int(2 * N * H * W * itemsize + H * W * 4),
        ),
    )(inv, xf)

    if Npad != N:
        out = out[:N]
    return out.reshape(B, C, H, W)


def pooling_reference(x, pool_size=3):
    """Pure-JAX reference (AvgPool2d count_include_pad=False, then subtract x)."""
    pad = pool_size // 2

    def win_sum(a):
        return jax.lax.reduce_window(
            a, 0.0, jax.lax.add,
            window_dimensions=(1, 1, pool_size, pool_size),
            window_strides=(1, 1, 1, 1),
            padding=((0, 0), (0, 0), (pad, pad), (pad, pad)))

    xf = x.astype(jnp.float32)
    s = win_sum(xf)
    c = win_sum(jnp.ones_like(xf))
    return (s / c - xf).astype(x.dtype)


if __name__ == "__main__":
    key = jax.random.PRNGKey(0)
    x = jax.random.normal(key, (2, 4, 16, 16), dtype=jnp.float32)

    y = pooling_forward(x, pool_size=3)
    jax.block_until_ready(y)

    y_ref = pooling_reference(x, pool_size=3)
    np.testing.assert_allclose(np.asarray(y), np.asarray(y_ref),
                               atol=1e-5, rtol=1e-5)
    print("KERNEL_OK")
</pallas_src>

<mosaic_0001>
module attributes {stable_mosaic.version = 11 : i64} {
  func.func @kernel(%arg0: i32, %arg1: memref<16x16xf32, #tpu.memory_space<vmem>>, %arg2: memref<4x16x16xf32, #tpu.memory_space<vmem>>, %arg3: memref<4x16x16xf32, #tpu.memory_space<vmem>>, %arg4: memref<4x18x18xf32, #tpu.memory_space<vmem>>) attributes {dimension_semantics = [#tpu.dimension_semantics<parallel>], iteration_bounds = array<i64: 2>, scalar_prefetch = 0 : i64, scratch_operands = 1 : i64, tpu.core_type = #tpu.core_type<tc>, window_params = [{pipeline_mode = #tpu.pipeline_mode<synchronous>, transform_indices = @transform_0, window_bounds = array<i64: 16, 16>}, {transform_indices = @transform_1, window_bounds = array<i64: 4, 16, 16>}, {transform_indices = @transform_2, window_bounds = array<i64: 4, 16, 16>}]} {
    %c0 = arith.constant 0 : index
    %c0_0 = arith.constant 0 : index
    %c0_1 = arith.constant 0 : index
    %0 = vector.load %arg2[%c0, %c0_0, %c0_1] : memref<4x16x16xf32, #tpu.memory_space<vmem>>, vector<4x16x16xf32>
    %cst = arith.constant 0.000000e+00 : f32
    %1 = vector.broadcast %cst : f32 to vector<4x18x18xf32>
    %c0_2 = arith.constant 0 : index
    %c0_3 = arith.constant 0 : index
    %c0_4 = arith.constant 0 : index
    %2 = vector.load %arg4[%c0_2, %c0_3, %c0_4] : memref<4x18x18xf32, #tpu.memory_space<vmem>>, vector<4x18x18xf32>
    tpu.vector_store %arg4[%c0_2, %c0_3, %c0_4], %1 {strides = array<i32>} : memref<4x18x18xf32, #tpu.memory_space<vmem>>, vector<4x18x18xf32>,
    %c0_5 = arith.constant 0 : index
    %c1 = arith.constant 1 : index
    %c1_6 = arith.constant 1 : index
    %3 = vector.load %arg4[%c0_5, %c1, %c1_6] : memref<4x18x18xf32, #tpu.memory_space<vmem>>, vector<4x16x16xf32>
    tpu.vector_store %arg4[%c0_5, %c1, %c1_6], %0 {strides = array<i32>} : memref<4x18x18xf32, #tpu.memory_space<vmem>>, vector<4x16x16xf32>,
    %c0_7 = arith.constant 0 : index
    %c0_8 = arith.constant 0 : index
    %c0_9 = arith.constant 0 : index
    %4 = vector.load %arg4[%c0_7, %c0_8, %c0_9] : memref<4x18x18xf32, #tpu.memory_space<vmem>>, vector<4x16x16xf32>
    %c0_10 = arith.constant 0 : index
    %c0_11 = arith.constant 0 : index
    %c1_12 = arith.constant 1 : index
    %5 = vector.load %arg4[%c0_10, %c0_11, %c1_12] : memref<4x18x18xf32, #tpu.memory_space<vmem>>, vector<4x16x16xf32>
    %6 = arith.addf %4, %5 : vector<4x16x16xf32>
    %c0_13 = arith.constant 0 : index
    %c0_14 = arith.constant 0 : index
    %c2 = arith.constant 2 : index
    %7 = vector.load %arg4[%c0_13, %c0_14, %c2] : memref<4x18x18xf32, #tpu.memory_space<vmem>>, vector<4x16x16xf32>
    %8 = arith.addf %6, %7 : vector<4x16x16xf32>
    %c0_15 = arith.constant 0 : index
    %c1_16 = arith.constant 1 : index
    %c0_17 = arith.constant 0 : index
    %9 = vector.load %arg4[%c0_15, %c1_16, %c0_17] : memref<4x18x18xf32, #tpu.memory_space<vmem>>, vector<4x16x16xf32>
    %10 = arith.addf %8, %9 : vector<4x16x16xf32>
    %c0_18 = arith.constant 0 : index
    %c1_19 = arith.constant 1 : index
    %c1_20 = arith.constant 1 : index
    %11 = vector.load %arg4[%c0_18, %c1_19, %c1_20] : memref<4x18x18xf32, #tpu.memory_space<vmem>>, vector<4x16x16xf32>
    %12 = arith.addf %10, %11 : vector<4x16x16xf32>
    %c0_21 = arith.constant 0 : index
    %c1_22 = arith.constant 1 : index
    %c2_23 = arith.constant 2 : index
    %13 = vector.load %arg4[%c0_21, %c1_22, %c2_23] : memref<4x18x18xf32, #tpu.memory_space<vmem>>, vector<4x16x16xf32>
    %14 = arith.addf %12, %13 : vector<4x16x16xf32>
    %c0_24 = arith.constant 0 : index
    %c2_25 = arith.constant 2 : index
    %c0_26 = arith.constant 0 : index
    %15 = vector.load %arg4[%c0_24, %c2_25, %c0_26] : memref<4x18x18xf32, #tpu.memory_space<vmem>>, vector<4x16x16xf32>
    %16 = arith.addf %14, %15 : vector<4x16x16xf32>
    %c0_27 = arith.constant 0 : index
    %c2_28 = arith.constant 2 : index
    %c1_29 = arith.constant 1 : index
    %17 = vector.load %arg4[%c0_27, %c2_28, %c1_29] : memref<4x18x18xf32, #tpu.memory_space<vmem>>, vector<4x16x16xf32>
    %18 = arith.addf %16, %17 : vector<4x16x16xf32>
    %c0_30 = arith.constant 0 : index
    %c2_31 = arith.constant 2 : index
    %c2_32 = arith.constant 2 : index
    %19 = vector.load %arg4[%c0_30, %c2_31, %c2_32] : memref<4x18x18xf32, #tpu.memory_space<vmem>>, vector<4x16x16xf32>
    %20 = arith.addf %18, %19 : vector<4x16x16xf32>
    %c0_33 = arith.constant 0 : index
    %c0_34 = arith.constant 0 : index
    %21 = vector.load %arg1[%c0_33, %c0_34] : memref<16x16xf32, #tpu.memory_space<vmem>>, vector<16x16xf32>
    %22 = vector.shape_cast %21 : vector<16x16xf32> to vector<1x16x16xf32>
    %23 = vector.broadcast %22 : vector<1x16x16xf32> to vector<4x16x16xf32>
    %24 = arith.mulf %20, %23 : vector<4x16x16xf32>
    %25 = arith.subf %24, %0 : vector<4x16x16xf32>
    %c0_35 = arith.constant 0 : index
    %c0_36 = arith.constant 0 : index
    %c0_37 = arith.constant 0 : index
    %26 = vector.load %arg3[%c0_35, %c0_36, %c0_37] : memref<4x16x16xf32, #tpu.memory_space<vmem>>, vector<4x16x16xf32>
    tpu.vector_store %arg3[%c0_35, %c0_36, %c0_37], %25 {strides = array<i32>} : memref<4x16x16xf32, #tpu.memory_space<vmem>>, vector<4x16x16xf32>,
    return
  }
  func.func @transform_0(%arg0: i32) -> (i32, i32) {
    %c0_i32 = arith.constant 0 : i32
    %c0_i32_0 = arith.constant 0 : i32
    %c0_i32_1 = arith.constant 0 : i32
    return %c0_i32, %c0_i32_0 : i32, i32
  }
  func.func @transform_1(%arg0: i32) -> (i32, i32, i32) {
    %c0_i32 = arith.constant 0 : i32
    %c0_i32_0 = arith.constant 0 : i32
    %c0_i32_1 = arith.constant 0 : i32
    return %arg0, %c0_i32, %c0_i32_0 : i32, i32, i32
  }
  func.func @transform_2(%arg0: i32) -> (i32, i32, i32) {
    %c0_i32 = arith.constant 0 : i32
    %c0_i32_0 = arith.constant 0 : i32
    %c0_i32_1 = arith.constant 0 : i32
    return %arg0, %c0_i32, %c0_i32_0 : i32, i32, i32
  }
}

</mosaic_0001>

<llo_original>
// kernel: tpu_custom_call.1
$region0: #{tpu_custom_call.1}
  #allocation0 [shape = 'u32[]', space=smem, size = 0x4, offset = 0x4, fixed_abs, tag = 'smem constant byte address 0x4 - core index']
  #allocation1 [shape = 'u32[144,128]{1,0:T(1,128)}', space=vmem, size = 0x12000, scoped, tag = 'internal scratch']
  #allocation2 [shape = 'f32[4,18,18]{2,1,0:T(8,128)}', space=vmem, size = 0xc000, scoped, tag = 'scratch operand']
  %s0 = inlined_call_operand.hbm [shape: f32[16,16], index: 0, kind: input, shape index: {}]
  %s1 = inlined_call_operand.hbm [shape: f32[8,16,16], index: 1, kind: input, shape index: {}]
  %s2 = inlined_call_operand.hbm [shape: f32[8,16,16], index: 2, kind: output, shape index: {}]
  %s3 = sld [smem:[#allocation0]]
  $region49: #{tpu_custom_call.1} parent=0
    _
  %s5 = ssub.s32 1, %s3
  %s6 = scalar_select 0, %s5, %s3
  $region1: #{tpu_custom_call.1} parent=0
    #allocation3 [shape = 'u8[8192]{0}', space=vmem, size = 0x2000, scoped, tag = 'input window, operand 0, single buffered']
    #allocation4 [shape = 's32[2]{0}', space=sflag, size = 0x8, scoped, tag = 'scoped memory for tpu_custom_call.1']
    #allocation5 [shape = 's32[2]{0}', space=sflag, size = 0x8, scoped, tag = 'scoped memory for tpu_custom_call.1']
    #allocation6 [shape = 'u8[65536]{0}', space=vmem, size = 0x10000, scoped, tag = 'input window, operand 1']
    #allocation7 [shape = 's32[2]{0}', space=sflag, size = 0x8, scoped, tag = 'scoped memory for tpu_custom_call.1']
    #allocation8 [shape = 'u8[65536]{0}', space=vmem, size = 0x10000, scoped, tag = 'output window, operand 0']
    %7 = vsyncpa [#allocation4], 0
    %8 = vsyncpa [#allocation7], 0
    %s9 = scalar_lea.sflag [#allocation7], 1
    %10 = vsyncpa %s9, 0
    %11 = vsyncpa [#allocation5], 0
    %s12 = scalar_lea.sflag [#allocation5], 1
    %13 = vsyncpa %s12, 0
    loop: start=0, step=1, limit=4
    $region2: #{tpu_custom_call.1} parent=1 // loop_pre_header
      _
    $region3: #{tpu_custom_call.1} parent=1 // loop_header
      %s15 = sphi 0, %s19
      %p16 = scmp.ge.s32.totalorder %s15, 4
      %s23 = sphi 0, %s23
      %s25 = sphi 0, %s23
      %s26 = sphi 0, %s25
      %s40 = sphi 0, %s26
      %s46 = sphi 0, %s48
      %s49 = sphi 0, %s46
      %s50 = sphi 0, %s49
      %s66 = sphi 0, %s50
      %s72 = sphi 0, %s74
      %s75 = sphi 0, %s72
      %s76 = sphi 0, %s75
      %s92 = sphi 0, %s76
    $region4: #{tpu_custom_call.1} parent=1 // loop_header_branch
      %18 = sbr.rel (%p16) target = $region8
    $region5: #{tpu_custom_call.1} parent=1 // loop_body
      %s20 = ssub.s32 %s15, 1
      %s21 = ssub.s32 %s15, 2
      %s22 = sadd.s32 %s15, 1
      %s24 = sadd.s32 %s23, 1
      %p27 = scmp.eq.s32.totalorder %s15, 1
      %p28 = scmp.ne.s32.totalorder %s23, %s25
      %p29 = scmp.eq.s32.totalorder %s15, 0
      %p30 = por %p28, %p29
      %p31 = scmp.ne.s32.totalorder %s23, %s25
      %p32 = scmp.eq.s32.totalorder %s20, 1
      %p33 = por %p31, %p32
      %p34 = scmp.ne.s32.totalorder %s25, %s26
      %p35 = scmp.eq.s32.totalorder %s20, 0
      %p36 = por %p34, %p35
      %p37 = scmp.ne.s32.totalorder %s25, %s26
      %p38 = scmp.eq.s32.totalorder %s21, 1
      %p39 = por %p37, %p38
      %p41 = scmp.ne.s32.totalorder %s26, %s40
      %p42 = scmp.eq.s32.totalorder %s21, 0
      %p43 = por %p41, %p42
      %s44 = ssub.s32 %s15, %s22
      %p45 = scmp.eq.s32.totalorder %s44, 0
      %s47 = sadd.s32 %s46, 1
      %s48 = scalar_select %p45, %s46, %s47
      %p51 = pneg %p45
      %p52 = scmp.eq.s32.totalorder %s15, 1
      %p53 = por %p51, %p52
      %p54 = scmp.ne.s32.totalorder %s46, %s49
      %p55 = scmp.eq.s32.totalorder %s15, 0
      %p56 = por %p54, %p55
      %p57 = scmp.ne.s32.totalorder %s46, %s49
      %p58 = scmp.eq.s32.totalorder %s20, 1
      %p59 = por %p57, %p58
      %p60 = scmp.ne.s32.totalorder %s49, %s50
      %p61 = scmp.eq.s32.totalorder %s20, 0
      %p62 = por %p60, %p61
      %p63 = scmp.ne.s32.totalorder %s49, %s50
      %p64 = scmp.eq.s32.totalorder %s21, 1
      %p65 = por %p63, %p64
      %p67 = scmp.ne.s32.totalorder %s50, %s66
      %p68 = scmp.eq.s32.totalorder %s21, 0
      %p69 = por %p67, %p68
      %s70 = ssub.s32 %s15, %s22
      %p71 = scmp.eq.s32.totalorder %s70, 0
      %s73 = sadd.s32 %s72, 1
      %s74 = scalar_select %p71, %s72, %s73
      %p77 = pneg %p71
      %p78 = scmp.eq.s32.totalorder %s15, 1
      %p79 = por %p77, %p78
      %p80 = scmp.ne.s32.totalorder %s72, %s75
      %p81 = scmp.eq.s32.totalorder %s15, 0
      %p82 = por %p80, %p81
      %p83 = scmp.ne.s32.totalorder %s72, %s75
      %p84 = scmp.eq.s32.totalorder %s20, 1
      %p85 = por %p83, %p84
      %p86 = scmp.ne.s32.totalorder %s75, %s76
      %p87 = scmp.eq.s32.totalorder %s20, 0
      %p88 = por %p86, %p87
      %p89 = scmp.ne.s32.totalorder %s75, %s76
      %p90 = scmp.eq.s32.totalorder %s21, 1
      %p91 = por %p89, %p90
      %p93 = scmp.ne.s32.totalorder %s76, %s92
      %p94 = scmp.eq.s32.totalorder %s21, 0
      %p95 = por %p93, %p94
      %p96 = scmp.le.s32.totalorder 1, %s15
      %p97 = scmp.lt.s32.totalorder %s15, 3
      %p98 = pnand %p96, %p97
      %p99 = pneg %p98
      // Predicated region
      $region9: #{tpu_custom_call.1} parent=5 // pred_check
        _
      $region10: #{tpu_custom_call.1} parent=5 // pred_check_branch
        %101 = sbr.rel (%p98) target = $region12
      $region11: #{tpu_custom_call.1} parent=5 // pred_region
        %s102 = ssub.s32 %s15, 1
        // Predicated region
        $region13: #{tpu_custom_call.1} parent=11 // pred_check
          %p103 = pneg %p36
        $region14: #{tpu_custom_call.1} parent=11 // pred_check_branch
          %105 = sbr.rel (%p103) target = $region16
        $region15: #{tpu_custom_call.1} parent=11 // pred_region
          %s107 = ssub.s32 256, 256
          %108 = vsyncadd [#allocation4], %s107
          %s109 = sshll.u32 [#allocation3], 4
          %s110 = int_to_ptr.vmem [resolvable:$true] %s109
          %115 = dma.hbm_to_vmem [thread:$0]  %s0, 256, %s110, [#allocation4], 128, 128, 8
        $region16: #{tpu_custom_call.1} parent=11 // pred_fallthru
          _
      $region12: #{tpu_custom_call.1} parent=5 // pred_fallthru
        _
      %p116 = scmp.lt.s32.totalorder %s15, 2
      // Predicated region
      $region17: #{tpu_custom_call.1} parent=5 // pred_check
        %p117 = pneg %p116
      $region18: #{tpu_custom_call.1} parent=5 // pred_check_branch
        %119 = sbr.rel (%p117) target = $region20
      $region19: #{tpu_custom_call.1} parent=5 // pred_region
        // Predicated region
        $region21: #{tpu_custom_call.1} parent=19 // pred_check
          %p120 = pneg %p56
        $region22: #{tpu_custom_call.1} parent=19 // pred_check_branch
          %122 = sbr.rel (%p120) target = $region24
        $region23: #{tpu_custom_call.1} parent=19 // pred_region
          %s123 = sand.u32 %s46, 1
          %s124 = scalar_lea.sflag [#allocation7], %s123
          %s125 = sand.u32 %s46, 1
          %s126 = smul.addr %s125, 64
          %s127 = scalar_lea.vmem [#allocation6], %s126
          %s128 = smul.u32 4, %s15
          %s130 = ssub.s32 1024, 1024
          %131 = vsyncadd %s124, %s130
          %s132 = smul.addr %s128, 2
          %s133 = smul.addr %s132, 128
          %s134 = scalar_lea.hbm %s1, %s133
          %s135 = sshll.u32 %s127, 4
          %s136 = int_to_ptr.vmem [resolvable:$true] %s135
          %141 = dma.hbm_to_vmem [thread:$0]  %s134, 1024, %s136, %s124, 128, 128, 8
        $region24: #{tpu_custom_call.1} parent=19 // pred_fallthru
          _
      $region20: #{tpu_custom_call.1} parent=5 // pred_fallthru
        _
      %p142 = scmp.le.s32.totalorder 1, %s15
      %p143 = scmp.lt.s32.totalorder %s15, 3
      %p144 = pnand %p142, %p143
      %p145 = pneg %p144
      // Predicated region
      $region25: #{tpu_custom_call.1} parent=5 // pred_check
        _
      $region26: #{tpu_custom_call.1} parent=5 // pred_check_branch
        %147 = sbr.rel (%p144) target = $region28
      $region27: #{tpu_custom_call.1} parent=5 // pred_region
        %s148 = ssub.s32 %s15, 1
        // Predicated region
        $region29: #{tpu_custom_call.1} parent=27 // pred_check
          %p149 = pneg %p36
        $region30: #{tpu_custom_call.1} parent=27 // pred_check_branch
          %151 = sbr.rel (%p149) target = $region32
        $region31: #{tpu_custom_call.1} parent=27 // pred_region
          %152 = dma.done [#allocation4], 256
        $region32: #{tpu_custom_call.1} parent=27 // pred_fallthru
          _
        %s153 = sand.u32 %s49, 1
        %s154 = scalar_lea.sflag [#allocation7], %s153
        %s155 = sand.u32 %s49, 1
        %s156 = smul.addr %s155, 64
        %s157 = scalar_lea.vmem [#allocation6], %s156
        // Predicated region
        $region33: #{tpu_custom_call.1} parent=27 // pred_check
          %p158 = pneg %p62
        $region34: #{tpu_custom_call.1} parent=27 // pred_check_branch
          %160 = sbr.rel (%p158) target = $region36
        $region35: #{tpu_custom_call.1} parent=27 // pred_region
          %161 = dma.done %s154, 1024
        $region36: #{tpu_custom_call.1} parent=27 // pred_fallthru
          _
        %p162 = pneg %p36
        %p163 = pneg %p33
        %s164 = sand.u32 %s49, 1
        %s165 = scalar_lea.sflag [#allocation7], %s164
        %s166 = sand.u32 %s49, 1
        %s167 = smul.addr %s166, 64
        %s168 = scalar_lea.vmem [#allocation6], %s167
        %p169 = pneg %p62
        %p170 = pneg %p59
        %p171 = pneg %p88
        %p172 = pneg %p85
        %s173 = sand.u32 %s75, 1
        %s174 = scalar_lea.sflag [#allocation5], %s173
        %s175 = sand.u32 %s75, 1
        %s176 = smul.addr %s175, 64
        %s177 = scalar_lea.vmem [#allocation8], %s176
        %s178 = smul.u32 4, %s20
        %s179 = smul.u32 4, %s20
        %v180 = vld [vmem:[%s157] sm:$0xff]
        %v181 = vld [vmem:[%s157 + $0x8] sm:$0xff]
        %v182 = vld [vmem:[%s157 + $0x10] sm:$0xff]
        %v183 = vld [vmem:[%s157 + $0x18] sm:$0xff]
        %v184 = vld [vmem:[%s157 + $0x20] sm:$0xff]
        %v185 = vld [vmem:[%s157 + $0x28] sm:$0xff]
        %v186 = vld [vmem:[%s157 + $0x30] sm:$0xff]
        %v187 = vld [vmem:[%s157 + $0x38] sm:$0xff]
        %vm188 = vcmask 146432
        %189 = vst.msk [vmem:[#allocation2] sm:$0xff] %vm188, 0.0
        %190 = vst.msk [vmem:[#allocation2 + $0x8] sm:$0xff] %vm188, 0.0
        %vm191 = vcmask 140288
        %192 = vst.msk [vmem:[#allocation2 + $0x10] sm:$0x3] %vm191, 0.0
        %193 = vst.msk [vmem:[#allocation2 + $0x18] sm:$0xff] %vm188, 0.0
        %194 = vst.msk [vmem:[#allocation2 + $0x20] sm:$0xff] %vm188, 0.0
        %195 = vst.msk [vmem:[#allocation2 + $0x28] sm:$0x3] %vm191, 0.0
        %196 = vst.msk [vmem:[#allocation2 + $0x30] sm:$0xff] %vm188, 0.0
        %197 = vst.msk [vmem:[#allocation2 + $0x38] sm:$0xff] %vm188, 0.0
        %198 = vst.msk [vmem:[#allocation2 + $0x40] sm:$0x3] %vm191, 0.0
        %199 = vst.msk [vmem:[#allocation2 + $0x48] sm:$0xff] %vm188, 0.0
        %200 = vst.msk [vmem:[#allocation2 + $0x50] sm:$0xff] %vm188, 0.0
        %201 = vst.msk [vmem:[#allocation2 + $0x58] sm:$0x3] %vm191, 0.0
        %210 = vrot.lane.b32.xlu0 %v180, 1
        %v211 = vpop.permute.xlu0 %210
        %212 = vrot.lane.b32.xlu0 %v181, 1
        %v213 = vpop.permute.xlu0 %212
        %214 = vrot.lane.b32.xlu0 %v182, 1
        %v215 = vpop.permute.xlu0 %214
        %216 = vrot.lane.b32.xlu0 %v183, 1
        %v217 = vpop.permute.xlu0 %216
        %218 = vrot.lane.b32.xlu0 %v184, 1
        %v219 = vpop.permute.xlu0 %218
        %220 = vrot.lane.b32.xlu0 %v185, 1
        %v221 = vpop.permute.xlu0 %220
        %222 = vrot.lane.b32.xlu0 %v186, 1
        %v223 = vpop.permute.xlu0 %222
        %224 = vrot.lane.b32.xlu0 %v187, 1
        %v225 = vpop.permute.xlu0 %224
        %vm234 = vcmask 138248
        %235 = vst.msk [vmem:[#allocation2 + $0x1] sm:$0xff] %vm234, %v211
        %236 = vst.msk [vmem:[#allocation2 + $0x9] sm:$0xff] %vm234, %v213
        %237 = vst.msk [vmem:[#allocation2 + $0x19] sm:$0xff] %vm234, %v215
        %238 = vst.msk [vmem:[#allocation2 + $0x21] sm:$0xff] %vm234, %v217
        %239 = vst.msk [vmem:[#allocation2 + $0x31] sm:$0xff] %vm234, %v219
        %240 = vst.msk [vmem:[#allocation2 + $0x39] sm:$0xff] %vm234, %v221
        %241 = vst.msk [vmem:[#allocation2 + $0x49] sm:$0xff] %vm234, %v223
        %242 = vst.msk [vmem:[#allocation2 + $0x51] sm:$0xff] %vm234, %v225
        %v243 = vld [vmem:[#allocation2] sm:$0xff]
        %v244 = vld [vmem:[#allocation2 + $0x8] sm:$0xff]
        %v245 = vld [vmem:[#allocation2 + $0x18] sm:$0xff]
        %v246 = vld [vmem:[#allocation2 + $0x20] sm:$0xff]
        %v247 = vld [vmem:[#allocation2 + $0x30] sm:$0xff]
        %v248 = vld [vmem:[#allocation2 + $0x38] sm:$0xff]
        %v249 = vld [vmem:[#allocation2 + $0x48] sm:$0xff]
        %v250 = vld [vmem:[#allocation2 + $0x50] sm:$0xff]
        %259 = vrot.lane.b32.xlu0 %v243, 127
        %v260 = vpop.permute.xlu0 %259
        %261 = vrot.lane.b32.xlu0 %v244, 127
        %v262 = vpop.permute.xlu0 %261
        %263 = vrot.lane.b32.xlu0 %v245, 127
        %v264 = vpop.permute.xlu0 %263
        %265 = vrot.lane.b32.xlu0 %v246, 127
        %v266 = vpop.permute.xlu0 %265
        %267 = vrot.lane.b32.xlu0 %v247, 127
        %v268 = vpop.permute.xlu0 %267
        %269 = vrot.lane.b32.xlu0 %v248, 127
        %v270 = vpop.permute.xlu0 %269
        %271 = vrot.lane.b32.xlu0 %v249, 127
        %v272 = vpop.permute.xlu0 %271
        %273 = vrot.lane.b32.xlu0 %v250, 127
        %v274 = vpop.permute.xlu0 %273
        %v283 = vadd.f32 %v243, %v260
        %v284 = vadd.f32 %v244, %v262
        %v285 = vadd.f32 %v245, %v264
        %v286 = vadd.f32 %v246, %v266
        %v287 = vadd.f32 %v247, %v268
        %v288 = vadd.f32 %v248, %v270
        %v289 = vadd.f32 %v249, %v272
        %v290 = vadd.f32 %v250, %v274
        %291 = vrot.lane.b32.xlu0 %v243, 126
        %v292 = vpop.permute.xlu0 %291
        %293 = vrot.lane.b32.xlu0 %v244, 126
        %v294 = vpop.permute.xlu0 %293
        %295 = vrot.lane.b32.xlu0 %v245, 126
        %v296 = vpop.permute.xlu0 %295
        %297 = vrot.lane.b32.xlu0 %v246, 126
        %v298 = vpop.permute.xlu0 %297
        %299 = vrot.lane.b32.xlu0 %v247, 126
        %v300 = vpop.permute.xlu0 %299
        %301 = vrot.lane.b32.xlu0 %v248, 126
        %v302 = vpop.permute.xlu0 %301
        %303 = vrot.lane.b32.xlu0 %v249, 126
        %v304 = vpop.permute.xlu0 %303
        %305 = vrot.lane.b32.xlu0 %v250, 126
        %v306 = vpop.permute.xlu0 %305
        %v315 = vadd.f32 %v283, %v292
        %v316 = vadd.f32 %v284, %v294
        %v317 = vadd.f32 %v285, %v296
        %v318 = vadd.f32 %v286, %v298
        %v319 = vadd.f32 %v287, %v300
        %v320 = vadd.f32 %v288, %v302
        %v321 = vadd.f32 %v289, %v304
        %v322 = vadd.f32 %v290, %v306
        %v323 = vld [vmem:[#allocation2 + $0x1] sm:$0xff]
        %v324 = vld [vmem:[#allocation2 + $0x9] sm:$0xff]
        %v325 = vld [vmem:[#allocation2 + $0x19] sm:$0xff]
        %v326 = vld [vmem:[#allocation2 + $0x21] sm:$0xff]
        %v327 = vld [vmem:[#allocation2 + $0x31] sm:$0xff]
        %v328 = vld [vmem:[#allocation2 + $0x39] sm:$0xff]
        %v329 = vld [vmem:[#allocation2 + $0x49] sm:$0xff]
        %v330 = vld [vmem:[#allocation2 + $0x51] sm:$0xff]
        %v331 = vadd.f32 %v315, %v323
        %v332 = vadd.f32 %v316, %v324
        %v333 = vadd.f32 %v317, %v325
        %v334 = vadd.f32 %v318, %v326
        %v335 = vadd.f32 %v319, %v327
        %v336 = vadd.f32 %v320, %v328
        %v337 = vadd.f32 %v321, %v329
        %v338 = vadd.f32 %v322, %v330
        %347 = vrot.lane.b32.xlu0 %v323, 127
        %v348 = vpop.permute.xlu0 %347
        %349 = vrot.lane.b32.xlu0 %v324, 127
        %v350 = vpop.permute.xlu0 %349
        %351 = vrot.lane.b32.xlu0 %v325, 127
        %v352 = vpop.permute.xlu0 %351
        %353 = vrot.lane.b32.xlu0 %v326, 127
        %v354 = vpop.permute.xlu0 %353
        %355 = vrot.lane.b32.xlu0 %v327, 127
        %v356 = vpop.permute.xlu0 %355
        %357 = vrot.lane.b32.xlu0 %v328, 127
        %v358 = vpop.permute.xlu0 %357
        %359 = vrot.lane.b32.xlu0 %v329, 127
        %v360 = vpop.permute.xlu0 %359
        %361 = vrot.lane.b32.xlu0 %v330, 127
        %v362 = vpop.permute.xlu0 %361
        %v371 = vadd.f32 %v331, %v348
        %v372 = vadd.f32 %v332, %v350
        %v373 = vadd.f32 %v333, %v352
        %v374 = vadd.f32 %v334, %v354
        %v375 = vadd.f32 %v335, %v356
        %v376 = vadd.f32 %v336, %v358
        %v377 = vadd.f32 %v337, %v360
        %v378 = vadd.f32 %v338, %v362
        %379 = vrot.lane.b32.xlu0 %v323, 126
        %v380 = vpop.permute.xlu0 %379
        %381 = vrot.lane.b32.xlu0 %v324, 126
        %v382 = vpop.permute.xlu0 %381
        %383 = vrot.lane.b32.xlu0 %v325, 126
        %v384 = vpop.permute.xlu0 %383
        %385 = vrot.lane.b32.xlu0 %v326, 126
        %v386 = vpop.permute.xlu0 %385
        %387 = vrot.lane.b32.xlu0 %v327, 126
        %v388 = vpop.permute.xlu0 %387
        %389 = vrot.lane.b32.xlu0 %v328, 126
        %v390 = vpop.permute.xlu0 %389
        %391 = vrot.lane.b32.xlu0 %v329, 126
        %v392 = vpop.permute.xlu0 %391
        %393 = vrot.lane.b32.xlu0 %v330, 126
        %v394 = vpop.permute.xlu0 %393
        %v403 = vadd.f32 %v371, %v380
        %v404 = vadd.f32 %v372, %v382
        %v405 = vadd.f32 %v373, %v384
        %v406 = vadd.f32 %v374, %v386
        %v407 = vadd.f32 %v375, %v388
        %v408 = vadd.f32 %v376, %v390
        %v409 = vadd.f32 %v377, %v392
        %v410 = vadd.f32 %v378, %v394
        %v411 = vld [vmem:[#allocation2 + $0x2] sm:$0xff]
        %v412 = vld [vmem:[#allocation2 + $0xa] sm:$0xff]
        %v413 = vld [vmem:[#allocation2 + $0x1a] sm:$0xff]
        %v414 = vld [vmem:[#allocation2 + $0x22] sm:$0xff]
        %v415 = vld [vmem:[#allocation2 + $0x32] sm:$0xff]
        %v416 = vld [vmem:[#allocation2 + $0x3a] sm:$0xff]
        %v417 = vld [vmem:[#allocation2 + $0x4a] sm:$0xff]
        %v418 = vld [vmem:[#allocation2 + $0x52] sm:$0xff]
        %v419 = vadd.f32 %v403, %v411
        %v420 = vadd.f32 %v404, %v412
        %v421 = vadd.f32 %v405, %v413
        %v422 = vadd.f32 %v406, %v414
        %v423 = vadd.f32 %v407, %v415
        %v424 = vadd.f32 %v408, %v416
        %v425 = vadd.f32 %v409, %v417
        %v426 = vadd.f32 %v410, %v418
        %435 = vrot.lane.b32.xlu0 %v411, 127
        %v436 = vpop.permute.xlu0 %435
        %437 = vrot.lane.b32.xlu0 %v412, 127
        %v438 = vpop.permute.xlu0 %437
        %439 = vrot.lane.b32.xlu0 %v413, 127
        %v440 = vpop.permute.xlu0 %439
        %441 = vrot.lane.b32.xlu0 %v414, 127
        %v442 = vpop.permute.xlu0 %441
        %443 = vrot.lane.b32.xlu0 %v415, 127
        %v444 = vpop.permute.xlu0 %443
        %445 = vrot.lane.b32.xlu0 %v416, 127
        %v446 = vpop.permute.xlu0 %445
        %447 = vrot.lane.b32.xlu0 %v417, 127
        %v448 = vpop.permute.xlu0 %447
        %449 = vrot.lane.b32.xlu0 %v418, 127
        %v450 = vpop.permute.xlu0 %449
        %v459 = vadd.f32 %v419, %v436
        %v460 = vadd.f32 %v420, %v438
        %v461 = vadd.f32 %v421, %v440
        %v462 = vadd.f32 %v422, %v442
        %v463 = vadd.f32 %v423, %v444
        %v464 = vadd.f32 %v424, %v446
        %v465 = vadd.f32 %v425, %v448
        %v466 = vadd.f32 %v426, %v450
        %467 = vrot.lane.b32.xlu0 %v411, 126
        %v468 = vpop.permute.xlu0 %467
        %469 = vrot.lane.b32.xlu0 %v412, 126
        %v470 = vpop.permute.xlu0 %469
        %471 = vrot.lane.b32.xlu0 %v413, 126
        %v472 = vpop.permute.xlu0 %471
        %473 = vrot.lane.b32.xlu0 %v414, 126
        %v474 = vpop.permute.xlu0 %473
        %475 = vrot.lane.b32.xlu0 %v415, 126
        %v476 = vpop.permute.xlu0 %475
        %477 = vrot.lane.b32.xlu0 %v416, 126
        %v478 = vpop.permute.xlu0 %477
        %479 = vrot.lane.b32.xlu0 %v417, 126
        %v480 = vpop.permute.xlu0 %479
        %481 = vrot.lane.b32.xlu0 %v418, 126
        %v482 = vpop.permute.xlu0 %481
        %v491 = vadd.f32 %v459, %v468
        %v492 = vadd.f32 %v460, %v470
        %v493 = vadd.f32 %v461, %v472
        %v494 = vadd.f32 %v462, %v474
        %v495 = vadd.f32 %v463, %v476
        %v496 = vadd.f32 %v464, %v478
        %v497 = vadd.f32 %v465, %v480
        %v498 = vadd.f32 %v466, %v482
        %v499 = vld [vmem:[#allocation3] sm:$0xff]
        %v500 = vld [vmem:[#allocation3 + $0x8] sm:$0xff]
        %v501 = vmul.f32 %v491, %v499
        %v502 = vmul.f32 %v492, %v500
        %v503 = vmul.f32 %v493, %v499
        %v504 = vmul.f32 %v494, %v500
        %v505 = vmul.f32 %v495, %v499
        %v506 = vmul.f32 %v496, %v500
        %v507 = vmul.f32 %v497, %v499
        %v508 = vmul.f32 %v498, %v500
        %v509 = vsub.f32 %v501, %v180
        %v510 = vsub.f32 %v502, %v181
        %v511 = vsub.f32 %v503, %v182
        %v512 = vsub.f32 %v504, %v183
        %v513 = vsub.f32 %v505, %v184
        %v514 = vsub.f32 %v506, %v185
        %v515 = vsub.f32 %v507, %v186
        %v516 = vsub.f32 %v508, %v187
        %vm517 = vcmask 130048
        %518 = vst.msk [vmem:[%s177] sm:$0xff] %vm517, %v509
        %519 = vst.msk [vmem:[%s177 + $0x8] sm:$0xff] %vm517, %v510
        %520 = vst.msk [vmem:[%s177 + $0x10] sm:$0xff] %vm517, %v511
        %521 = vst.msk [vmem:[%s177 + $0x18] sm:$0xff] %vm517, %v512
        %522 = vst.msk [vmem:[%s177 + $0x20] sm:$0xff] %vm517, %v513
        %523 = vst.msk [vmem:[%s177 + $0x28] sm:$0xff] %vm517, %v514
        %524 = vst.msk [vmem:[%s177 + $0x30] sm:$0xff] %vm517, %v515
        %525 = vst.msk [vmem:[%s177 + $0x38] sm:$0xff] %vm517, %v516
        %s526 = sand.u32 %s75, 1
        %s527 = scalar_lea.sflag [#allocation5], %s526
        %s528 = sand.u32 %s75, 1
        %s529 = smul.addr %s528, 64
        %s530 = scalar_lea.vmem [#allocation8], %s529
        // Predicated region
        $region37: #{tpu_custom_call.1} parent=27 // pred_check
          %p531 = pneg %p85
        $region38: #{tpu_custom_call.1} parent=27 // pred_check_branch
          %533 = sbr.rel (%p531) target = $region40
        $region39: #{tpu_custom_call.1} parent=27 // pred_region
          %s534 = smul.u32 4, %s20
          %s536 = ssub.s32 1024, 1024
          %537 = vsyncadd %s527, %s536
          %s538 = smul.addr %s534, 2
          %s539 = smul.addr %s538, 128
          %s540 = scalar_lea.hbm %s2, %s539
          %s541 = sshll.u32 %s530, 4
          %s542 = int_to_ptr.vmem [resolvable:$true] %s541
          %547 = dma.vmem_to_hbm [thread:$0]  %s542, 1024, %s540, %s527, 128, 128, 8
        $region40: #{tpu_custom_call.1} parent=27 // pred_fallthru
          _
      $region28: #{tpu_custom_call.1} parent=5 // pred_fallthru
        _
      %p548 = scmp.le.s32.totalorder 2, %s15
      // Predicated region
      $region41: #{tpu_custom_call.1} parent=5 // pred_check
        %p549 = pneg %p548
      $region42: #{tpu_custom_call.1} parent=5 // pred_check_branch
        %551 = sbr.rel (%p549) target = $region44
      $region43: #{tpu_custom_call.1} parent=5 // pred_region
        %s552 = ssub.s32 %s15, 2
        // Predicated region
        $region45: #{tpu_custom_call.1} parent=43 // pred_check
          %p553 = pneg %p91
        $region46: #{tpu_custom_call.1} parent=43 // pred_check_branch
          %555 = sbr.rel (%p553) target = $region48
        $region47: #{tpu_custom_call.1} parent=43 // pred_region
          %s556 = sand.u32 %s76, 1
          %s557 = scalar_lea.sflag [#allocation5], %s556
          %s558 = sand.u32 %s76, 1
          %s559 = smul.addr %s558, 64
          %s560 = scalar_lea.vmem [#allocation8], %s559
          %561 = dma.done %s557, 1024
        $region48: #{tpu_custom_call.1} parent=43 // pred_fallthru
          _
      $region44: #{tpu_custom_call.1} parent=5 // pred_fallthru
        _
    $region6: #{tpu_custom_call.1} parent=1 // loop_footer
      %s19 = sadd.s32 1, %s15
    $region7: #{tpu_custom_call.1} parent=1 // loop_footer_branch
      %14 = sbr.rel target = $region3
    $region8: #{tpu_custom_call.1} parent=1 // loop_exit
      _
    %562 = vsyncpa [#allocation4], 1
    %s563 = scalar_lea.sflag [#allocation4], 1
    %564 = vsyncpa %s563, 1
    %565 = vsyncpa [#allocation7], 1
    %s566 = scalar_lea.sflag [#allocation7], 1
    %567 = vsyncpa %s566, 1
    %568 = vsyncpa [#allocation5], 1
    %s569 = scalar_lea.sflag [#allocation5], 1
    %570 = vsyncpa %s569, 1

</llo_original>
